<compile_context>
chip_gen: v7x
topology: tpu7x:2x2x1
jax: 0.10.0
libtpu: 0.0.40
codegen_flags: <defaults>
</compile_context>

<pallas_src>
import jax
import jax.numpy as jnp
from jax.experimental import pallas as pl
from jax.experimental.pallas import tpu as pltpu


def _round_up(x, m):
    return ((x + m - 1) // m) * m


def _make_kernel(total_rows, block_rows, num_reg_elems):
    # Global normalizers (NOT per-block shapes) so tiled partial sums are exact.
    inv_n_reg = 1.0 / float(num_reg_elems)
    inv_b = 1.0 / float(total_rows)

    def kernel(pred_ref, true_ref, logits_ref, labels_ref, out_ref):
        tile = pl.program_id(0)

        # Global row ids for this tile -> mask padded rows.  [TB, 1] sublane layout.
        row = tile * block_rows + jax.lax.broadcasted_iota(
            jnp.int32, (block_rows, 1), 0)
        valid = (row < total_rows).astype(jnp.float32)                  # [TB, 1]

        # ---- task "reg": MSE partial (sum of squared diffs * 1/global_N) ----
        diff = pred_ref[...].astype(jnp.float32) - true_ref[...].astype(jnp.float32)
        sq_rows = jnp.sum(diff * diff, axis=-1, keepdims=True)          # [TB, 1]
        mse_part = jnp.sum(sq_rows * valid) * inv_n_reg

        # ---- task "cls": cross entropy partial with integer labels ----
        logits = logits_ref[...].astype(jnp.float32)                    # [TB, C]
        labels = labels_ref[...]                                        # [TB, 1] i32
        m = jnp.max(logits, axis=-1, keepdims=True)                     # [TB, 1]
        lse = m + jnp.log(jnp.sum(jnp.exp(logits - m), axis=-1, keepdims=True))
        cls_ids = jax.lax.broadcasted_iota(jnp.int32, logits.shape, 1)  # [TB, C]
        picked = jnp.sum(jnp.where(cls_ids == labels, logits, 0.0),
                         axis=-1, keepdims=True)                        # [TB, 1]
        ce_part = jnp.sum((lse - picked) * valid) * inv_b

        # Lane-dense per-tile partial (whole (8,128) vreg, unmasked vst).
        out_ref[...] = jnp.full((8, 128), mse_part + ce_part, dtype=jnp.float32)

    return kernel


def multitask_loss(y_pred, y_true, *, block_rows=512,
                   vmem_budget_bytes=12 * 1024 * 1024):
    """Sum of per-task losses (task 'reg': MSE, task 'cls': cross entropy).

    y_pred: {"reg": [B, D] float, "cls": [B, C] float logits}
    y_true: {"reg": [B, D] float, "cls": [B] int labels (one-hot also accepted)}
    Inputs may be bf16; they are upcast to f32 inside the kernel.
    """
    pred_reg = y_pred["reg"]
    true_reg = y_true["reg"]
    logits = y_pred["cls"]
    labels = y_true["cls"]

    B, D = pred_reg.shape
    Bc, C = logits.shape
    assert B == Bc, "this concrete instantiation assumes a shared batch dim"

    if labels.ndim == 2:          # convenience: accept one-hot, convert to labels
        labels = jnp.argmax(labels, axis=-1)
    labels = labels.reshape(B, 1).astype(jnp.int32)

    # --- row-tile selection: biggest tile whose double-buffered working set fits
    # comfortably under the scoped VMEM limit (conservative for v7x's 64 MiB VMEM).
    bytes_per_row = (2 * D + C + 1) * 4          # f32 upper bound per input row
    tb = min(block_rows, _round_up(B, 8))
    tb = max(8, (tb // 8) * 8)
    while tb > 8 and 2 * tb * bytes_per_row > vmem_budget_bytes:
        tb = max(8, ((tb // 2) // 8) * 8)

    b_pad = _round_up(B, tb)
    num_tiles = b_pad // tb
    pad = b_pad - B
    if pad:
        pred_reg = jnp.pad(pred_reg, ((0, pad), (0, 0)))
        true_reg = jnp.pad(true_reg, ((0, pad), (0, 0)))
        logits = jnp.pad(logits, ((0, pad), (0, 0)))
        labels = jnp.pad(labels, ((0, pad), (0, 0)))

    kernel = _make_kernel(total_rows=B, block_rows=tb, num_reg_elems=B * D)

    partials = pl.pallas_call(
        kernel,
        out_shape=jax.ShapeDtypeStruct((num_tiles * 8, 128), jnp.float32),
        grid=(num_tiles,),
        in_specs=[
            pl.BlockSpec((tb, D), lambda i: (i, 0)),   # pred_reg
            pl.BlockSpec((tb, D), lambda i: (i, 0)),   # true_reg
            pl.BlockSpec((tb, C), lambda i: (i, 0)),   # logits
            pl.BlockSpec((tb, 1), lambda i: (i, 0)),   # int labels
        ],
        out_specs=pl.BlockSpec((8, 128), lambda i: (i, 0)),
        compiler_params=pltpu.CompilerParams(
            dimension_semantics=("parallel",)),
    )(pred_reg, true_reg, logits, labels)

    # Tiny cross-tile reduction (num_tiles scalars) done in plain JAX.
    return jnp.sum(partials[::8, 0])


def _reference(y_pred, y_true):
    # Pure-JAX reference matching torch.nn.MSELoss + CrossEntropyLoss semantics.
    mse = jnp.mean((y_pred["reg"] - y_true["reg"]) ** 2)
    logp = jax.nn.log_softmax(y_pred["cls"], axis=-1)
    ce = -jnp.mean(
        jnp.take_along_axis(logp, y_true["cls"][:, None].astype(jnp.int32), axis=-1))
    return mse + ce


if __name__ == "__main__":
    key = jax.random.PRNGKey(0)
    k1, k2, k3, k4 = jax.random.split(key, 4)

    # Small shapes; B=72 with block_rows=32 exercises the grid (3 tiles) and
    # the padded-row masking path.
    B, D, C = 72, 128, 128
    pred_reg = jax.random.normal(k1, (B, D), dtype=jnp.float32)
    true_reg = jax.random.normal(k2, (B, D), dtype=jnp.float32)
    logits_cls = jax.random.normal(k3, (B, C), dtype=jnp.float32)
    labels_cls = jax.random.randint(k4, (B,), 0, C, dtype=jnp.int32)

    y_pred = {"reg": pred_reg, "cls": logits_cls}
    y_true = {"reg": true_reg, "cls": labels_cls}

    loss = jax.block_until_ready(multitask_loss(y_pred, y_true, block_rows=32))
    ref = jax.block_until_ready(_reference(y_pred, y_true))

    assert jnp.isfinite(loss), "non-finite loss"
    assert abs(float(loss) - float(ref)) < 1e-3, (float(loss), float(ref))
    print("KERNEL_OK")
</pallas_src>

<mosaic_0001>
module attributes {stable_mosaic.version = 11 : i64} {
  func.func @kernel(%arg0: i32, %arg1: memref<32x128xf32, #tpu.memory_space<vmem>>, %arg2: memref<32x128xf32, #tpu.memory_space<vmem>>, %arg3: memref<32x128xf32, #tpu.memory_space<vmem>>, %arg4: memref<32x1xi32, #tpu.memory_space<vmem>>, %arg5: memref<8x128xf32, #tpu.memory_space<vmem>>) attributes {dimension_semantics = [#tpu.dimension_semantics<parallel>], iteration_bounds = array<i64: 3>, scalar_prefetch = 0 : i64, scratch_operands = 0 : i64, tpu.core_type = #tpu.core_type<tc>, window_params = [{transform_indices = @transform_0, window_bounds = array<i64: 32, 128>}, {transform_indices = @transform_1, window_bounds = array<i64: 32, 128>}, {transform_indices = @transform_2, window_bounds = array<i64: 32, 128>}, {transform_indices = @transform_3, window_bounds = array<i64: 32, 1>}, {transform_indices = @transform_4, window_bounds = array<i64: 8, 128>}]} {
    %c32_i32 = arith.constant 32 : i32
    %0 = arith.muli %arg0, %c32_i32 : i32
    %1 = tpu.iota {dimensions = array<i32: 0>} : vector<32x1xi32>
    %2 = vector.broadcast %0 : i32 to vector<32x1xi32>
    %3 = arith.addi %2, %1 : vector<32x1xi32>
    %c72_i32 = arith.constant 72 : i32
    %4 = vector.broadcast %c72_i32 : i32 to vector<32x1xi32>
    %5 = arith.cmpi slt, %3, %4 : vector<32x1xi32>
    %6 = arith.extui %5 : vector<32x1xi1> to vector<32x1xi32>
    %7 = arith.sitofp %6 : vector<32x1xi32> to vector<32x1xf32>
    %c0 = arith.constant 0 : index
    %c0_0 = arith.constant 0 : index
    %8 = vector.load %arg1[%c0, %c0_0] : memref<32x128xf32, #tpu.memory_space<vmem>>, vector<32x128xf32>
    %c0_1 = arith.constant 0 : index
    %c0_2 = arith.constant 0 : index
    %9 = vector.load %arg2[%c0_1, %c0_2] : memref<32x128xf32, #tpu.memory_space<vmem>>, vector<32x128xf32>
    %10 = arith.subf %8, %9 : vector<32x128xf32>
    %11 = arith.mulf %10, %10 : vector<32x128xf32>
    %cst = arith.constant dense<0.000000e+00> : vector<32xf32>
    %12 = vector.multi_reduction <add>, %11, %cst [1] : vector<32x128xf32> to vector<32xf32>
    %13 = vector.shape_cast %12 : vector<32xf32> to vector<32x1xf32>
    %14 = arith.mulf %13, %7 : vector<32x1xf32>
    %15 = vector.shape_cast %14 : vector<32x1xf32> to vector<1x32x1xf32>
    %cst_3 = arith.constant dense<0.000000e+00> : vector<1xf32>
    %16 = vector.multi_reduction <add>, %15, %cst_3 [1, 2] : vector<1x32x1xf32> to vector<1xf32>
    %17 = vector.shape_cast %16 : vector<1xf32> to vector<1x1x1xf32>
    %18 = vector.extract %17[0, 0, 0] : f32 from vector<1x1x1xf32>
    %cst_4 = arith.constant 1.08506945E-4 : f32
    %19 = arith.mulf %18, %cst_4 : f32
    %c0_5 = arith.constant 0 : index
    %c0_6 = arith.constant 0 : index
    %20 = vector.load %arg3[%c0_5, %c0_6] : memref<32x128xf32, #tpu.memory_space<vmem>>, vector<32x128xf32>
    %c0_7 = arith.constant 0 : index
    %c0_8 = arith.constant 0 : index
    %21 = vector.load %arg4[%c0_7, %c0_8] : memref<32x1xi32, #tpu.memory_space<vmem>>, vector<32x1xi32>
    %cst_9 = arith.constant dense<0xFF800000> : vector<32xf32>
    %22 = vector.multi_reduction <maximumf>, %20, %cst_9 [1] : vector<32x128xf32> to vector<32xf32>
    %23 = vector.shape_cast %22 : vector<32xf32> to vector<32x1xf32>
    %24 = vector.broadcast %23 : vector<32x1xf32> to vector<32x128xf32>
    %25 = arith.subf %20, %24 : vector<32x128xf32>
    %26 = math.exp %25 : vector<32x128xf32>
    %cst_10 = arith.constant dense<0.000000e+00> : vector<32xf32>
    %27 = vector.multi_reduction <add>, %26, %cst_10 [1] : vector<32x128xf32> to vector<32xf32>
    %28 = vector.shape_cast %27 : vector<32xf32> to vector<32x1xf32>
    %29 = math.log %28 : vector<32x1xf32>
    %30 = arith.addf %23, %29 : vector<32x1xf32>
    %31 = tpu.iota {dimensions = array<i32: 1>} : vector<32x128xi32>
    %32 = vector.broadcast %21 : vector<32x1xi32> to vector<32x128xi32>
    %33 = arith.cmpi eq, %31, %32 : vector<32x128xi32>
    %cst_11 = arith.constant 0.000000e+00 : f32
    %34 = vector.broadcast %cst_11 : f32 to vector<32x128xf32>
    %35 = arith.select %33, %20, %34 : vector<32x128xi1>, vector<32x128xf32>
    %cst_12 = arith.constant dense<0.000000e+00> : vector<32xf32>
    %36 = vector.multi_reduction <add>, %35, %cst_12 [1] : vector<32x128xf32> to vector<32xf32>
    %37 = vector.shape_cast %36 : vector<32xf32> to vector<32x1xf32>
    %38 = arith.subf %30, %37 : vector<32x1xf32>
    %39 = arith.mulf %38, %7 : vector<32x1xf32>
    %40 = vector.shape_cast %39 : vector<32x1xf32> to vector<1x32x1xf32>
    %cst_13 = arith.constant dense<0.000000e+00> : vector<1xf32>
    %41 = vector.multi_reduction <add>, %40, %cst_13 [1, 2] : vector<1x32x1xf32> to vector<1xf32>
    %42 = vector.shape_cast %41 : vector<1xf32> to vector<1x1x1xf32>
    %43 = vector.extract %42[0, 0, 0] : f32 from vector<1x1x1xf32>
    %cst_14 = arith.constant 0.013888889 : f32
    %44 = arith.mulf %43, %cst_14 : f32
    %45 = arith.addf %19, %44 : f32
    %46 = vector.broadcast %45 : f32 to vector<8x128xf32>
    %c0_15 = arith.constant 0 : index
    %c0_16 = arith.constant 0 : index
    %47 = vector.load %arg5[%c0_15, %c0_16] : memref<8x128xf32, #tpu.memory_space<vmem>>, vector<8x128xf32>
    tpu.vector_store %arg5[%c0_15, %c0_16], %46 {strides = array<i32>} : memref<8x128xf32, #tpu.memory_space<vmem>>, vector<8x128xf32>,
    return
  }
  func.func @transform_0(%arg0: i32) -> (i32, i32) {
    %c0_i32 = arith.constant 0 : i32
    %c0_i32_0 = arith.constant 0 : i32
    return %arg0, %c0_i32 : i32, i32
  }
  func.func @transform_1(%arg0: i32) -> (i32, i32) {
    %c0_i32 = arith.constant 0 : i32
    %c0_i32_0 = arith.constant 0 : i32
    return %arg0, %c0_i32 : i32, i32
  }
  func.func @transform_2(%arg0: i32) -> (i32, i32) {
    %c0_i32 = arith.constant 0 : i32
    %c0_i32_0 = arith.constant 0 : i32
    return %arg0, %c0_i32 : i32, i32
  }
  func.func @transform_3(%arg0: i32) -> (i32, i32) {
    %c0_i32 = arith.constant 0 : i32
    %c0_i32_0 = arith.constant 0 : i32
    return %arg0, %c0_i32 : i32, i32
  }
  func.func @transform_4(%arg0: i32) -> (i32, i32) {
    %c0_i32 = arith.constant 0 : i32
    %c0_i32_0 = arith.constant 0 : i32
    return %arg0, %c0_i32 : i32, i32
  }
}

</mosaic_0001>

<llo_original>
// kernel: tpu_custom_call.1
$region0: #{tpu_custom_call.1}
  #allocation0 [shape = 'u32[]', space=smem, size = 0x4, offset = 0x4, fixed_abs, tag = 'smem constant byte address 0x4 - core index']
  #allocation1 [shape = 'u32[144,128]{1,0:T(1,128)}', space=vmem, size = 0x12000, scoped, tag = 'internal scratch']
  %s0 = inlined_call_operand.vmem [shape: f32[96,128], index: 0, kind: input, shape index: {}]
  %s1 = inlined_call_operand.hbm [shape: f32[96,128], index: 1, kind: input, shape index: {}]
  %s2 = inlined_call_operand.hbm [shape: f32[96,128], index: 2, kind: input, shape index: {}]
  %s3 = inlined_call_operand.vmem [shape: s32[96,1], index: 3, kind: input, shape index: {}]
  %s4 = inlined_call_operand.hbm [shape: f32[24,128], index: 4, kind: output, shape index: {}]
  %s5 = sld [smem:[#allocation0]]
  $region57: #{tpu_custom_call.1} parent=0
    _
  %s7 = ssub.s32 1, %s5
  %s8 = scalar_select 0, %s7, %s5
  $region1: #{tpu_custom_call.1} parent=0
    #allocation2 [shape = 'u8[32768]{0}', space=vmem, size = 0x8000, scoped, tag = 'input window, operand 1']
    #allocation3 [shape = 's32[2]{0}', space=sflag, size = 0x8, scoped, tag = 'scoped memory for tpu_custom_call.1']
    #allocation4 [shape = 's32[2]{0}', space=sflag, size = 0x8, scoped, tag = 'scoped memory for tpu_custom_call.1']
    #allocation5 [shape = 'u8[32768]{0}', space=vmem, size = 0x8000, scoped, tag = 'input window, operand 2']
    #allocation6 [shape = 's32[2]{0}', space=sflag, size = 0x8, scoped, tag = 'scoped memory for tpu_custom_call.1']
    #allocation7 [shape = 'u8[8192]{0}', space=vmem, size = 0x2000, scoped, tag = 'output window, operand 0']
    %9 = vsyncpa [#allocation3], 0
    %s10 = scalar_lea.sflag [#allocation3], 1
    %11 = vsyncpa %s10, 0
    %12 = vsyncpa [#allocation6], 0
    %s13 = scalar_lea.sflag [#allocation6], 1
    %14 = vsyncpa %s13, 0
    %15 = vsyncpa [#allocation4], 0
    %s16 = scalar_lea.sflag [#allocation4], 1
    %17 = vsyncpa %s16, 0
    loop: start=0, step=1, limit=5
    $region2: #{tpu_custom_call.1} parent=1 // loop_pre_header
      _
    $region3: #{tpu_custom_call.1} parent=1 // loop_header
      %s19 = sphi 0, %s23
      %p20 = scmp.ge.s32.totalorder %s19, 5
      %s29 = sphi 0, %s31
      %s32 = sphi 0, %s29
      %s33 = sphi 0, %s32
      %s49 = sphi 0, %s33
      %s55 = sphi 0, %s57
      %s58 = sphi 0, %s55
      %s59 = sphi 0, %s58
      %s75 = sphi 0, %s59
      %s81 = sphi 0, %s83
      %s84 = sphi 0, %s81
      %s85 = sphi 0, %s84
      %s101 = sphi 0, %s85
      %s107 = sphi 0, %s109
      %s110 = sphi 0, %s107
      %s111 = sphi 0, %s110
      %s127 = sphi 0, %s111
      %s133 = sphi 0, %s135
      %s136 = sphi 0, %s133
      %s137 = sphi 0, %s136
      %s153 = sphi 0, %s137
    $region4: #{tpu_custom_call.1} parent=1 // loop_header_branch
      %22 = sbr.rel (%p20) target = $region8
    $region5: #{tpu_custom_call.1} parent=1 // loop_body
      %s24 = ssub.s32 %s19, 1
      %s25 = ssub.s32 %s19, 2
      %s26 = sadd.s32 %s19, 1
      %s27 = ssub.s32 %s19, %s26
      %p28 = scmp.eq.s32.totalorder %s27, 0
      %s30 = sadd.s32 %s29, 1
      %s31 = scalar_select %p28, %s29, %s30
      %p34 = pneg %p28
      %p35 = scmp.eq.s32.totalorder %s19, 2
      %p36 = por %p34, %p35
      %p37 = scmp.ne.s32.totalorder %s29, %s32
      %p38 = scmp.eq.s32.totalorder %s19, 0
      %p39 = por %p37, %p38
      %p40 = scmp.ne.s32.totalorder %s29, %s32
      %p41 = scmp.eq.s32.totalorder %s24, 2
      %p42 = por %p40, %p41
      %p43 = scmp.ne.s32.totalorder %s32, %s33
      %p44 = scmp.eq.s32.totalorder %s24, 0
      %p45 = por %p43, %p44
      %p46 = scmp.ne.s32.totalorder %s32, %s33
      %p47 = scmp.eq.s32.totalorder %s25, 2
      %p48 = por %p46, %p47
      %p50 = scmp.ne.s32.totalorder %s33, %s49
      %p51 = scmp.eq.s32.totalorder %s25, 0
      %p52 = por %p50, %p51
      %s53 = ssub.s32 %s19, %s26
      %p54 = scmp.eq.s32.totalorder %s53, 0
      %s56 = sadd.s32 %s55, 1
      %s57 = scalar_select %p54, %s55, %s56
      %p60 = pneg %p54
      %p61 = scmp.eq.s32.totalorder %s19, 2
      %p62 = por %p60, %p61
      %p63 = scmp.ne.s32.totalorder %s55, %s58
      %p64 = scmp.eq.s32.totalorder %s19, 0
      %p65 = por %p63, %p64
      %p66 = scmp.ne.s32.totalorder %s55, %s58
      %p67 = scmp.eq.s32.totalorder %s24, 2
      %p68 = por %p66, %p67
      %p69 = scmp.ne.s32.totalorder %s58, %s59
      %p70 = scmp.eq.s32.totalorder %s24, 0
      %p71 = por %p69, %p70
      %p72 = scmp.ne.s32.totalorder %s58, %s59
      %p73 = scmp.eq.s32.totalorder %s25, 2
      %p74 = por %p72, %p73
      %p76 = scmp.ne.s32.totalorder %s59, %s75
      %p77 = scmp.eq.s32.totalorder %s25, 0
      %p78 = por %p76, %p77
      %s79 = ssub.s32 %s19, %s26
      %p80 = scmp.eq.s32.totalorder %s79, 0
      %s82 = sadd.s32 %s81, 1
      %s83 = scalar_select %p80, %s81, %s82
      %p86 = pneg %p80
      %p87 = scmp.eq.s32.totalorder %s19, 2
      %p88 = por %p86, %p87
      %p89 = scmp.ne.s32.totalorder %s81, %s84
      %p90 = scmp.eq.s32.totalorder %s19, 0
      %p91 = por %p89, %p90
      %p92 = scmp.ne.s32.totalorder %s81, %s84
      %p93 = scmp.eq.s32.totalorder %s24, 2
      %p94 = por %p92, %p93
      %p95 = scmp.ne.s32.totalorder %s84, %s85
      %p96 = scmp.eq.s32.totalorder %s24, 0
      %p97 = por %p95, %p96
      %p98 = scmp.ne.s32.totalorder %s84, %s85
      %p99 = scmp.eq.s32.totalorder %s25, 2
      %p100 = por %p98, %p99
      %p102 = scmp.ne.s32.totalorder %s85, %s101
      %p103 = scmp.eq.s32.totalorder %s25, 0
      %p104 = por %p102, %p103
      %s105 = ssub.s32 %s19, %s26
      %p106 = scmp.eq.s32.totalorder %s105, 0
      %s108 = sadd.s32 %s107, 1
      %s109 = scalar_select %p106, %s107, %s108
      %p112 = pneg %p106
      %p113 = scmp.eq.s32.totalorder %s19, 2
      %p114 = por %p112, %p113
      %p115 = scmp.ne.s32.totalorder %s107, %s110
      %p116 = scmp.eq.s32.totalorder %s19, 0
      %p117 = por %p115, %p116
      %p118 = scmp.ne.s32.totalorder %s107, %s110
      %p119 = scmp.eq.s32.totalorder %s24, 2
      %p120 = por %p118, %p119
      %p121 = scmp.ne.s32.totalorder %s110, %s111
      %p122 = scmp.eq.s32.totalorder %s24, 0
      %p123 = por %p121, %p122
      %p124 = scmp.ne.s32.totalorder %s110, %s111
      %p125 = scmp.eq.s32.totalorder %s25, 2
      %p126 = por %p124, %p125
      %p128 = scmp.ne.s32.totalorder %s111, %s127
      %p129 = scmp.eq.s32.totalorder %s25, 0
      %p130 = por %p128, %p129
      %s131 = ssub.s32 %s19, %s26
      %p132 = scmp.eq.s32.totalorder %s131, 0
      %s134 = sadd.s32 %s133, 1
      %s135 = scalar_select %p132, %s133, %s134
      %p138 = pneg %p132
      %p139 = scmp.eq.s32.totalorder %s19, 2
      %p140 = por %p138, %p139
      %p141 = scmp.ne.s32.totalorder %s133, %s136
      %p142 = scmp.eq.s32.totalorder %s19, 0
      %p143 = por %p141, %p142
      %p144 = scmp.ne.s32.totalorder %s133, %s136
      %p145 = scmp.eq.s32.totalorder %s24, 2
      %p146 = por %p144, %p145
      %p147 = scmp.ne.s32.totalorder %s136, %s137
      %p148 = scmp.eq.s32.totalorder %s24, 0
      %p149 = por %p147, %p148
      %p150 = scmp.ne.s32.totalorder %s136, %s137
      %p151 = scmp.eq.s32.totalorder %s25, 2
      %p152 = por %p150, %p151
      %p154 = scmp.ne.s32.totalorder %s137, %s153
      %p155 = scmp.eq.s32.totalorder %s25, 0
      %p156 = por %p154, %p155
      %p157 = scmp.le.s32.totalorder 1, %s19
      %p158 = scmp.lt.s32.totalorder %s19, 4
      %p159 = pnand %p157, %p158
      %p160 = pneg %p159
      // Predicated region
      $region9: #{tpu_custom_call.1} parent=5 // pred_check
        _
      $region10: #{tpu_custom_call.1} parent=5 // pred_check_branch
        %162 = sbr.rel (%p159) target = $region12
      $region11: #{tpu_custom_call.1} parent=5 // pred_region
        %s163 = ssub.s32 %s19, 1
      $region12: #{tpu_custom_call.1} parent=5 // pred_fallthru
        _
      %p164 = scmp.lt.s32.totalorder %s19, 3
      // Predicated region
      $region13: #{tpu_custom_call.1} parent=5 // pred_check
        %p165 = pneg %p164
      $region14: #{tpu_custom_call.1} parent=5 // pred_check_branch
        %167 = sbr.rel (%p165) target = $region16
      $region15: #{tpu_custom_call.1} parent=5 // pred_region
        // Predicated region
        $region17: #{tpu_custom_call.1} parent=15 // pred_check
          %p168 = pneg %p39
        $region18: #{tpu_custom_call.1} parent=15 // pred_check_branch
          %170 = sbr.rel (%p168) target = $region20
        $region19: #{tpu_custom_call.1} parent=15 // pred_region
          %s171 = smul.u32 4, %s19
          %p172 = scmp.lt.s32.totalorder %s171, 11
          %s173 = scalar_select %p172, %s171, 11
          %s174 = smul.addr %s173, 8
          %s175 = scalar_lea.vmem %s0, %s174
          %s176 = smul.u32 4, %s19
        $region20: #{tpu_custom_call.1} parent=15 // pred_fallthru
          _
        // Predicated region
        $region21: #{tpu_custom_call.1} parent=15 // pred_check
          %p177 = pneg %p65
        $region22: #{tpu_custom_call.1} parent=15 // pred_check_branch
          %179 = sbr.rel (%p177) target = $region24
        $region23: #{tpu_custom_call.1} parent=15 // pred_region
          %s180 = sand.u32 %s55, 1
          %s181 = scalar_lea.sflag [#allocation3], %s180
          %s182 = sand.u32 %s55, 1
          %s183 = smul.addr %s182, 32
          %s184 = scalar_lea.vmem [#allocation2], %s183
          %s185 = smul.u32 4, %s19
          %s187 = ssub.s32 512, 512
          %188 = vsyncadd %s181, %s187
          %s189 = smul.addr %s185, 128
          %s190 = scalar_lea.hbm %s1, %s189
          %s191 = sshll.u32 %s184, 4
          %s192 = int_to_ptr.vmem [resolvable:$true] %s191
          %197 = dma.hbm_to_vmem [thread:$0]  %s190, 512, %s192, %s181, 128, 128, 8
        $region24: #{tpu_custom_call.1} parent=15 // pred_fallthru
          _
        // Predicated region
        $region25: #{tpu_custom_call.1} parent=15 // pred_check
          %p198 = pneg %p91
        $region26: #{tpu_custom_call.1} parent=15 // pred_check_branch
          %200 = sbr.rel (%p198) target = $region28
        $region27: #{tpu_custom_call.1} parent=15 // pred_region
          %s201 = sand.u32 %s81, 1
          %s202 = scalar_lea.sflag [#allocation6], %s201
          %s203 = sand.u32 %s81, 1
          %s204 = smul.addr %s203, 32
          %s205 = scalar_lea.vmem [#allocation5], %s204
          %s206 = smul.u32 4, %s19
          %s208 = ssub.s32 512, 512
          %209 = vsyncadd %s202, %s208
          %s210 = smul.addr %s206, 128
          %s211 = scalar_lea.hbm %s2, %s210
          %s212 = sshll.u32 %s205, 4
          %s213 = int_to_ptr.vmem [resolvable:$true] %s212
          %218 = dma.hbm_to_vmem [thread:$0]  %s211, 512, %s213, %s202, 128, 128, 8
        $region28: #{tpu_custom_call.1} parent=15 // pred_fallthru
          _
        // Predicated region
        $region29: #{tpu_custom_call.1} parent=15 // pred_check
          %p219 = pneg %p117
        $region30: #{tpu_custom_call.1} parent=15 // pred_check_branch
          %221 = sbr.rel (%p219) target = $region32
        $region31: #{tpu_custom_call.1} parent=15 // pred_region
          %s222 = smul.u32 4, %s19
          %p223 = scmp.lt.s32.totalorder %s222, 11
          %s224 = scalar_select %p223, %s222, 11
          %s225 = smul.addr %s224, 8
          %s226 = scalar_lea.vmem %s3, %s225
          %s227 = smul.u32 4, %s19
        $region32: #{tpu_custom_call.1} parent=15 // pred_fallthru
          _
      $region16: #{tpu_custom_call.1} parent=5 // pred_fallthru
        _
      %p228 = scmp.le.s32.totalorder 1, %s19
      %p229 = scmp.lt.s32.totalorder %s19, 4
      %p230 = pnand %p228, %p229
      %p231 = pneg %p230
      // Predicated region
      $region33: #{tpu_custom_call.1} parent=5 // pred_check
        _
      $region34: #{tpu_custom_call.1} parent=5 // pred_check_branch
        %233 = sbr.rel (%p230) target = $region36
      $region35: #{tpu_custom_call.1} parent=5 // pred_region
        %s234 = ssub.s32 %s19, 1
        %s235 = sand.u32 %s58, 1
        %s236 = scalar_lea.sflag [#allocation3], %s235
        %s237 = sand.u32 %s58, 1
        %s238 = smul.addr %s237, 32
        %s239 = scalar_lea.vmem [#allocation2], %s238
        // Predicated region
        $region37: #{tpu_custom_call.1} parent=35 // pred_check
          %p240 = pneg %p71
        $region38: #{tpu_custom_call.1} parent=35 // pred_check_branch
          %242 = sbr.rel (%p240) target = $region40
        $region39: #{tpu_custom_call.1} parent=35 // pred_region
          %243 = dma.done %s236, 512
        $region40: #{tpu_custom_call.1} parent=35 // pred_fallthru
          _
        %s244 = sand.u32 %s84, 1
        %s245 = scalar_lea.sflag [#allocation6], %s244
        %s246 = sand.u32 %s84, 1
        %s247 = smul.addr %s246, 32
        %s248 = scalar_lea.vmem [#allocation5], %s247
        // Predicated region
        $region41: #{tpu_custom_call.1} parent=35 // pred_check
          %p249 = pneg %p97
        $region42: #{tpu_custom_call.1} parent=35 // pred_check_branch
          %251 = sbr.rel (%p249) target = $region44
        $region43: #{tpu_custom_call.1} parent=35 // pred_region
          %252 = dma.done %s245, 512
        $region44: #{tpu_custom_call.1} parent=35 // pred_fallthru
          _
        %s253 = smul.u32 4, %s24
        %p254 = scmp.lt.s32.totalorder %s253, 11
        %s255 = scalar_select %p254, %s253, 11
        %s256 = smul.addr %s255, 8
        %s257 = scalar_lea.vmem %s0, %s256
        %p258 = pneg %p45
        %p259 = pneg %p42
        %s260 = sand.u32 %s58, 1
        %s261 = scalar_lea.sflag [#allocation3], %s260
        %s262 = sand.u32 %s58, 1
        %s263 = smul.addr %s262, 32
        %s264 = scalar_lea.vmem [#allocation2], %s263
        %p265 = pneg %p71
        %p266 = pneg %p68
        %s267 = sand.u32 %s84, 1
        %s268 = scalar_lea.sflag [#allocation6], %s267
        %s269 = sand.u32 %s84, 1
        %s270 = smul.addr %s269, 32
        %s271 = scalar_lea.vmem [#allocation5], %s270
        %p272 = pneg %p97
        %p273 = pneg %p94
        %s274 = smul.u32 4, %s24
        %p275 = scmp.lt.s32.totalorder %s274, 11
        %s276 = scalar_select %p275, %s274, 11
        %s277 = smul.addr %s276, 8
        %s278 = scalar_lea.vmem %s3, %s277
        %p279 = pneg %p123
        %p280 = pneg %p120
        %p281 = pneg %p149
        %p282 = pneg %p146
        %s283 = sand.u32 %s136, 1
        %s284 = scalar_lea.sflag [#allocation4], %s283
        %s285 = sand.u32 %s136, 1
        %s286 = smul.addr %s285, 8
        %s287 = scalar_lea.vmem [#allocation7], %s286
        %s288 = smul.u32 4, %s24
        %p289 = scmp.lt.s32.totalorder %s288, 11
        %s290 = scalar_select %p289, %s288, 11
        %s291 = smul.addr %s290, 8
        %s292 = scalar_lea.vmem %s0, %s291
        %s293 = smul.u32 4, %s24
        %s294 = smul.u32 4, %s24
        %s295 = smul.u32 4, %s24
        %s296 = smul.u32 4, %s24
        %p297 = scmp.lt.s32.totalorder %s296, 11
        %s298 = scalar_select %p297, %s296, 11
        %s299 = smul.addr %s298, 8
        %s300 = scalar_lea.vmem %s3, %s299
        %s301 = smul.u32 4, %s24
        %s302 = smul.u32 %s24, 32
        %v303 = vlaneseq
        %v304 = vshrl.u32 %v303, 7
        %v305 = vadd.s32 %v304, 8
        %v306 = vadd.s32 %v304, 16
        %v307 = vadd.s32 %v304, 24
        %v308 = vstv %s302
        %v309 = vadd.s32 %v308, %v304
        %v310 = vadd.s32 %v308, %v305
        %v311 = vadd.s32 %v308, %v306
        %v312 = vadd.s32 %v308, %v307
        %vm313 = vcmp.lt.s32.totalorder %v309, 72
        %vm314 = vcmp.lt.s32.totalorder %v310, 72
        %vm315 = vcmp.lt.s32.totalorder %v311, 72
        %vm316 = vcmp.lt.s32.totalorder %v312, 72
        %v317 = vsel %vm313, 1, 0
        %v318 = vsel %vm314, 1, 0
        %v319 = vsel %vm315, 1, 0
        %v320 = vsel %vm316, 1, 0
        %v321 = vcvt.s32.f32 %v317
        %v322 = vcvt.s32.f32 %v318
        %v323 = vcvt.s32.f32 %v319
        %v324 = vcvt.s32.f32 %v320
        %v325 = vld [vmem:[%s292] sm:$0xff]
        %v326 = vld [vmem:[%s292 + $0x8] sm:$0xff]
        %v327 = vld [vmem:[%s292 + $0x10] sm:$0xff]
        %v328 = vld [vmem:[%s292 + $0x18] sm:$0xff]
        %v329 = vld [vmem:[%s239] sm:$0xff]
        %v330 = vld [vmem:[%s239 + $0x8] sm:$0xff]
        %v331 = vld [vmem:[%s239 + $0x10] sm:$0xff]
        %v332 = vld [vmem:[%s239 + $0x18] sm:$0xff]
        %v333 = vsub.f32 %v325, %v329
        %v334 = vsub.f32 %v326, %v330
        %v335 = vsub.f32 %v327, %v331
        %v336 = vsub.f32 %v328, %v332
        %v337 = vmul.f32 %v333, %v333
        %v338 = vmul.f32 %v334, %v334
        %v339 = vmul.f32 %v335, %v335
        %v340 = vmul.f32 %v336, %v336
        %341 = vadd.xlane.f32.xlu0 %v337
        %v342 = vpop.xlane.xlu0 %341
        %343 = vadd.xlane.f32.xlu0 %v338
        %v344 = vpop.xlane.xlu0 %343
        %345 = vadd.xlane.f32.xlu0 %v339
        %v346 = vpop.xlane.xlu0 %345
        %347 = vadd.xlane.f32.xlu0 %v340
        %v348 = vpop.xlane.xlu0 %347
        %v349 = vmul.f32 %v342, %v321
        %v350 = vmul.f32 %v344, %v322
        %v351 = vmul.f32 %v346, %v323
        %v352 = vmul.f32 %v348, %v324
        %vm353 = vcmask 7168
        %v354 = vsel %vm353, %v349, 0.0
        %v355 = vsel %vm353, %v350, 0.0
        %v356 = vadd.f32 %v354, %v355
        %v357 = vsel %vm353, %v351, 0.0
        %v358 = vadd.f32 %v356, %v357
        %v359 = vsel %vm353, %v352, 0.0
        %v360 = vadd.f32 %v358, %v359
        %361 = vadd.xlane.f32.xlu0 %v360
        %v362 = vpop.xlane.xlu0 %361
        %v363 = vrot.slane %v362, 4
        %v364 = vadd.f32 %v362, %v363
        %v365 = vrot.slane %v364, 2
        %v366 = vadd.f32 %v364, %v365
        %v367 = vrot.slane %v366, 1
        %v368 = vadd.f32 %v366, %v367
        %s369 = vtos %v368
        %s370 = smul.f32 %s369, 0.000108506945
        %v371 = vld [vmem:[%s248] sm:$0xff]
        %v372 = vld [vmem:[%s248 + $0x8] sm:$0xff]
        %v373 = vld [vmem:[%s248 + $0x10] sm:$0xff]
        %v374 = vld [vmem:[%s248 + $0x18] sm:$0xff]
        %v375 = vld [vmem:[%s300] sm:$0xff]
        %v376 = vld [vmem:[%s300 + $0x8] sm:$0xff]
        %v377 = vld [vmem:[%s300 + $0x10] sm:$0xff]
        %v378 = vld [vmem:[%s300 + $0x18] sm:$0xff]
        %379 = vmax.xlane.f32.xlu0 %v371
        %v380 = vpop.xlane.xlu0 %379
        %381 = vmax.xlane.f32.xlu0 %v372
        %v382 = vpop.xlane.xlu0 %381
        %383 = vmax.xlane.f32.xlu0 %v373
        %v384 = vpop.xlane.xlu0 %383
        %385 = vmax.xlane.f32.xlu0 %v374
        %v386 = vpop.xlane.xlu0 %385
        %v387 = vsub.f32 %v371, %v380
        %v388 = vsub.f32 %v372, %v382
        %v389 = vsub.f32 %v373, %v384
        %v390 = vsub.f32 %v374, %v386
        %v391 = vmul.f32 %v387, 1.442695
        %v392 = vpow.pop %v391
        %v393 = vmul.f32 %v388, 1.442695
        %v394 = vpow.pop %v393
        %v395 = vmul.f32 %v389, 1.442695
        %v396 = vpow.pop %v395
        %v397 = vmul.f32 %v390, 1.442695
        %v398 = vpow.pop %v397
        %399 = vadd.xlane.f32.xlu0 %v392
        %v400 = vpop.xlane.xlu0 %399
        %401 = vadd.xlane.f32.xlu0 %v394
        %v402 = vpop.xlane.xlu0 %401
        %403 = vadd.xlane.f32.xlu0 %v396
        %v404 = vpop.xlane.xlu0 %403
        %405 = vadd.xlane.f32.xlu0 %v398
        %v406 = vpop.xlane.xlu0 %405
        %v407 = vlog2.pop %v400
        %v408 = vmul.f32 %v407, 0.6931472
        %v409 = vlog2.pop %v402
        %v410 = vmul.f32 %v409, 0.6931472
        %v411 = vlog2.pop %v404
        %v412 = vmul.f32 %v411, 0.6931472
        %v413 = vlog2.pop %v406
        %v414 = vmul.f32 %v413, 0.6931472
        %v415 = vadd.f32 %v380, %v408
        %v416 = vadd.f32 %v382, %v410
        %v417 = vadd.f32 %v384, %v412
        %v418 = vadd.f32 %v386, %v414
        %v419 = vlaneseq
        %v420 = vand.u32 %v419, 127
        %421 = vset.pattern.permute.xlu0 0
        %422 = vperm.xlu0 %421, %v375
        %v423 = vpop.permute.xlu0 %422
        %424 = vset.pattern.permute.xlu0 0
        %425 = vperm.xlu0 %424, %v376
        %v426 = vpop.permute.xlu0 %425
        %427 = vset.pattern.permute.xlu0 0
        %428 = vperm.xlu0 %427, %v377
        %v429 = vpop.permute.xlu0 %428
        %430 = vset.pattern.permute.xlu0 0
        %431 = vperm.xlu0 %430, %v378
        %v432 = vpop.permute.xlu0 %431
        %vm433 = vcmp.eq.s32.totalorder %v420, %v423
        %vm434 = vcmp.eq.s32.totalorder %v420, %v426
        %vm435 = vcmp.eq.s32.totalorder %v420, %v429
        %vm436 = vcmp.eq.s32.totalorder %v420, %v432
        %v437 = vsel %vm433, %v371, 0.0
        %v438 = vsel %vm434, %v372, 0.0
        %v439 = vsel %vm435, %v373, 0.0
        %v440 = vsel %vm436, %v374, 0.0
        %441 = vadd.xlane.f32.xlu0 %v437
        %v442 = vpop.xlane.xlu0 %441
        %443 = vadd.xlane.f32.xlu0 %v438
        %v444 = vpop.xlane.xlu0 %443
        %445 = vadd.xlane.f32.xlu0 %v439
        %v446 = vpop.xlane.xlu0 %445
        %447 = vadd.xlane.f32.xlu0 %v440
        %v448 = vpop.xlane.xlu0 %447
        %v449 = vsub.f32 %v415, %v442
        %v450 = vsub.f32 %v416, %v444
        %v451 = vsub.f32 %v417, %v446
        %v452 = vsub.f32 %v418, %v448
        %v453 = vmul.f32 %v449, %v321
        %v454 = vmul.f32 %v450, %v322
        %v455 = vmul.f32 %v451, %v323
        %v456 = vmul.f32 %v452, %v324
        %v457 = vsel %vm353, %v453, 0.0
        %v458 = vsel %vm353, %v454, 0.0
        %v459 = vadd.f32 %v457, %v458
        %v460 = vsel %vm353, %v455, 0.0
        %v461 = vadd.f32 %v459, %v460
        %v462 = vsel %vm353, %v456, 0.0
        %v463 = vadd.f32 %v461, %v462
        %464 = vadd.xlane.f32.xlu0 %v463
        %v465 = vpop.xlane.xlu0 %464
        %v466 = vrot.slane %v465, 4
        %v467 = vadd.f32 %v465, %v466
        %v468 = vrot.slane %v467, 2
        %v469 = vadd.f32 %v467, %v468
        %v470 = vrot.slane %v469, 1
        %v471 = vadd.f32 %v469, %v470
        %s472 = vtos %v471
        %s473 = smul.f32 %s472, 0.013888889
        %s474 = sadd.f32 %s370, %s473
        %v475 = vstv %s474
        %476 = vst [vmem:[%s287] sm:$0xff] %v475
        %s477 = sand.u32 %s136, 1
        %s478 = scalar_lea.sflag [#allocation4], %s477
        %s479 = sand.u32 %s136, 1
        %s480 = smul.addr %s479, 8
        %s481 = scalar_lea.vmem [#allocation7], %s480
        // Predicated region
        $region45: #{tpu_custom_call.1} parent=35 // pred_check
          %p482 = pneg %p146
        $region46: #{tpu_custom_call.1} parent=35 // pred_check_branch
          %484 = sbr.rel (%p482) target = $region48
        $region47: #{tpu_custom_call.1} parent=35 // pred_region
          %s486 = ssub.s32 128, 128
          %487 = vsyncadd %s478, %s486
          %s488 = smul.addr %s24, 128
          %s489 = scalar_lea.hbm %s4, %s488
          %s491 = sshll.u32 %s481, 4
          %s492 = int_to_ptr.vmem [resolvable:$true] %s491
          %494 = dma.vmem_to_hbm [thread:$0]  %s492, 128, %s489, %s478
        $region48: #{tpu_custom_call.1} parent=35 // pred_fallthru
          _
      $region36: #{tpu_custom_call.1} parent=5 // pred_fallthru
        _
      %p495 = scmp.le.s32.totalorder 2, %s19
      // Predicated region
      $region49: #{tpu_custom_call.1} parent=5 // pred_check
        %p496 = pneg %p495
      $region50: #{tpu_custom_call.1} parent=5 // pred_check_branch
        %498 = sbr.rel (%p496) target = $region52
      $region51: #{tpu_custom_call.1} parent=5 // pred_region
        %s499 = ssub.s32 %s19, 2
        // Predicated region
        $region53: #{tpu_custom_call.1} parent=51 // pred_check
          %p500 = pneg %p152
        $region54: #{tpu_custom_call.1} parent=51 // pred_check_branch
          %502 = sbr.rel (%p500) target = $region56
        $region55: #{tpu_custom_call.1} parent=51 // pred_region
          %s503 = sand.u32 %s137, 1
          %s504 = scalar_lea.sflag [#allocation4], %s503
          %s505 = sand.u32 %s137, 1
          %s506 = smul.addr %s505, 8
          %s507 = scalar_lea.vmem [#allocation7], %s506
          %508 = dma.done %s504, 128
        $region56: #{tpu_custom_call.1} parent=51 // pred_fallthru
          _
      $region52: #{tpu_custom_call.1} parent=5 // pred_fallthru
        _
    $region6: #{tpu_custom_call.1} parent=1 // loop_footer
      %s23 = sadd.s32 1, %s19
    $region7: #{tpu_custom_call.1} parent=1 // loop_footer_branch
      %18 = sbr.rel target = $region3
    $region8: #{tpu_custom_call.1} parent=1 // loop_exit
      _
    %509 = vsyncpa [#allocation3], 1
    %s510 = scalar_lea.sflag [#allocation3], 1
    %511 = vsyncpa %s510, 1
    %512 = vsyncpa [#allocation6], 1
    %s513 = scalar_lea.sflag [#allocation6], 1
    %514 = vsyncpa %s513, 1
    %515 = vsyncpa [#allocation4], 1
    %s516 = scalar_lea.sflag [#allocation4], 1
    %517 = vsyncpa %s516, 1

</llo_original>
